<compile_context>
chip_gen: v5e
topology: v5e:2x2
jax: 0.10.0
libtpu: 0.0.40
codegen_flags: <defaults>
</compile_context>

<pallas_src>
import jax
import jax.numpy as jnp
from jax import lax
from jax.experimental import pallas as pl
from jax.experimental.pallas import tpu as pltpu


def _scorer_kernel(
    x_ref,                     # (block_b, n_type)  natural layout x tile (f32)
    w1_ref, b1_ref,            # (128, n_type) bf16, (128, 1) f32   BN0 folded
    w2_ref, b2_ref,            # (256, 128)   bf16, (256, 1) f32    BN1 folded
    w3_ref, b3_ref,            # (128, 256)   bf16, (128, 1) f32    BN2 folded
    w4_ref, b4_ref,            # (128, 1) f32,      (1, 1) f32      BN3 folded
    o_ref,                     # (1, block_b)
):
    # Layer 1: Linear(n_type,128) + ReLU. Contract dim 1 of w1 with dim 1 of
    # the natural-layout x tile -> (128, block_b): batch lands on the lane
    # axis with no host-side transpose of x. bf16 operands, f32 accumulate.
    x_bf = x_ref[...].astype(jnp.bfloat16)
    h = lax.dot_general(
        w1_ref[...], x_bf,
        dimension_numbers=(((1,), (1,)), ((), ())),
        preferred_element_type=jnp.float32,
    ) + b1_ref[...]
    h = jnp.maximum(h, 0.0)                                    # (128, Bt) f32

    # Layer 2: Linear(128,256) + ReLU.
    h = jnp.dot(w2_ref[...], h.astype(jnp.bfloat16),
                preferred_element_type=jnp.float32) + b2_ref[...]
    h = jnp.maximum(h, 0.0)                                    # (256, Bt) f32

    # Layer 3: Linear(256,128) + ReLU.
    h = jnp.dot(w3_ref[...], h.astype(jnp.bfloat16),
                preferred_element_type=jnp.float32) + b3_ref[...]
    h = jnp.maximum(h, 0.0)                                    # (128, Bt) f32

    # Dropout(p=0.2): identity in eval mode.
    # Layer 4: Linear(128,1) + Sigmoid. M=1 output -> keep it off the MXU:
    # VPU broadcast-multiply by the (128,1) weight column + sublane reduce.
    z = jnp.sum(w4_ref[...] * h, axis=0, keepdims=True) + b4_ref[...]
    o_ref[...] = jax.nn.sigmoid(z).astype(o_ref.dtype)         # (1, Bt)


def _fold_bn_into_linear(bn, w, b, eps=1e-5):
    """Fold y = (h*s + c) @ W + b  ->  h @ (diag(s)W) + (c@W + b).  All f32."""
    gamma, beta, mean, var = bn
    s = gamma / jnp.sqrt(var + eps)
    c = beta - mean * s
    w_f = w * s[:, None]          # (in, out)
    b_f = b + c @ w               # (out,)
    return w_f, b_f


def _default_block_b(B):
    if B <= 256:
        return B
    # Lane-dense tiles (multiple of 128), capped at 4096 rows (f32
    # intermediates stay well inside v7x's 32 MiB scoped VMEM), sized so the
    # grid has an even number of programs >= 2 (clean split across v7x's two
    # TensorCores via the "parallel" batch axis).
    n_blocks = pl.cdiv(B, 4096)
    if n_blocks < 2:
        n_blocks = 2
    elif n_blocks % 2:
        n_blocks += 1
    return min(4096, 128 * pl.cdiv(pl.cdiv(B, n_blocks), 128))


def scorer_forward(x, params, *, block_b=None):
    """x: [B, n_type] float32 -> [B] float32 (matches Scorer.forward squeeze)."""
    B, n_type = x.shape
    if block_b is None:
        block_b = _default_block_b(B)
    assert block_b == B or block_b % 128 == 0, (
        "block_b must equal B or be a multiple of 128")

    # Fold BN affines into the Linear layers (float32, matches eps=1e-5).
    w1, b1 = _fold_bn_into_linear(params["bn0"], *params["fc1"])
    w2, b2 = _fold_bn_into_linear(params["bn1"], *params["fc2"])
    w3, b3 = _fold_bn_into_linear(params["bn2"], *params["fc3"])
    w4, b4 = _fold_bn_into_linear(params["bn3"], *params["fc4"])

    # Feature-major weights. Big matmul weights in bf16 (f32 accumulation in
    # the kernel); biases and the final VPU weight column stay f32.
    w1t = w1.T.astype(jnp.bfloat16)       # (128, n_type)
    w2t = w2.T.astype(jnp.bfloat16)       # (256, 128)
    w3t = w3.T.astype(jnp.bfloat16)       # (128, 256)
    w4c = w4.astype(jnp.float32)          # (128, 1) column, used on the VPU
    b1c, b2c, b3c = b1[:, None], b2[:, None], b3[:, None]
    b4c = b4[:, None]                     # (1, 1)

    grid = (pl.cdiv(B, block_b),)

    def const2d(a):
        # Whole-array block with a constant block index: stays VMEM-resident.
        return pl.BlockSpec(a.shape, lambda i: (0, 0))

    in_specs = [
        pl.BlockSpec((block_b, n_type), lambda i: (i, 0)),   # x tile, natural
        const2d(w1t), const2d(b1c),
        const2d(w2t), const2d(b2c),
        const2d(w3t), const2d(b3c),
        const2d(w4c), const2d(b4c),
    ]
    out_spec = pl.BlockSpec((1, block_b), lambda i: (0, i))   # lane-dense out

    weight_bytes = int(
        w1t.size * 2 + w2t.size * 2 + w3t.size * 2 + w4c.size * 4
        + b1c.size * 4 + b2c.size * 4 + b3c.size * 4 + b4c.size * 4)
    cost = pl.CostEstimate(
        flops=2 * B * (n_type * 128 + 128 * 256 + 256 * 128 + 128),
        transcendentals=B,
        bytes_accessed=B * (n_type * 4 + 4) + weight_bytes,
    )

    out = pl.pallas_call(
        _scorer_kernel,
        out_shape=jax.ShapeDtypeStruct((1, B), jnp.float32),
        grid_spec=pltpu.PrefetchScalarGridSpec(
            num_scalar_prefetch=0,
            grid=grid,
            in_specs=in_specs,
            out_specs=out_spec,
        ),
        compiler_params=pltpu.CompilerParams(
            dimension_semantics=("parallel",),
            # Explicit headroom so block_b=4096 f32 intermediates are safe on
            # v5e's 16 MiB scoped default as well as v6e/v7x.
            vmem_limit_bytes=48 * 1024 * 1024,
        ),
        cost_estimate=cost,
    )(x, w1t, b1c, w2t, b2c, w3t, b3c, w4c, b4c)

    return out[0]  # [B]  (== .squeeze() of the (B, 1) PyTorch output)


def init_params(key, n_type):
    """Deterministic synthetic parameters matching Scorer.__init__ shapes."""
    ks = jax.random.split(key, 16)

    def linear(kw, kb, fan_in, fan_out):
        bound = 1.0 / jnp.sqrt(fan_in)
        w = jax.random.uniform(kw, (fan_in, fan_out), jnp.float32, -bound, bound)
        b = jax.random.uniform(kb, (fan_out,), jnp.float32, -bound, bound)
        return w, b

    def bn(kg, kb, km, kv, c):
        gamma = 1.0 + 0.1 * jax.random.normal(kg, (c,), jnp.float32)
        beta = 0.1 * jax.random.normal(kb, (c,), jnp.float32)
        mean = 0.1 * jax.random.normal(km, (c,), jnp.float32)
        var = 1.0 + 0.1 * jax.random.uniform(kv, (c,), jnp.float32)
        return gamma, beta, mean, var

    return {
        "bn0": bn(ks[0], ks[1], ks[2], ks[3], n_type),
        "fc1": linear(ks[4], ks[5], n_type, 128),
        "bn1": bn(ks[6], ks[7], ks[8], ks[9], 128),
        "fc2": linear(ks[10], ks[11], 128, 256),
        "bn2": bn(ks[12], ks[13], ks[14], ks[15], 256),
        "fc3": linear(jax.random.fold_in(key, 100), jax.random.fold_in(key, 101), 256, 128),
        "bn3": bn(jax.random.fold_in(key, 102), jax.random.fold_in(key, 103),
                  jax.random.fold_in(key, 104), jax.random.fold_in(key, 105), 128),
        "fc4": linear(jax.random.fold_in(key, 106), jax.random.fold_in(key, 107), 128, 1),
    }


def scorer_reference(x, params):
    """Pure-JAX f32 reference of the eval-mode forward pass."""
    def bn(h, p):
        g, b, m, v = p
        return (h - m) / jnp.sqrt(v + 1e-5) * g + b

    h = bn(x, params["bn0"])
    h = jnp.maximum(h @ params["fc1"][0] + params["fc1"][1], 0.0)
    h = bn(h, params["bn1"])
    h = jnp.maximum(h @ params["fc2"][0] + params["fc2"][1], 0.0)
    h = bn(h, params["bn2"])
    h = jnp.maximum(h @ params["fc3"][0] + params["fc3"][1], 0.0)
    h = bn(h, params["bn3"])
    # Dropout(p=0.2) is identity in eval mode.
    z = h @ params["fc4"][0] + params["fc4"][1]
    return jax.nn.sigmoid(z)[:, 0]


if __name__ == "__main__":
    key = jax.random.PRNGKey(0)
    n_type = 32

    kx, kp, kx2 = jax.random.split(key, 3)
    params = init_params(kp, n_type)

    # Small single-tile case.
    B = 8
    x = jax.random.normal(kx, (B, n_type), jnp.float32)
    out = jax.block_until_ready(scorer_forward(x, params))
    ref = scorer_reference(x, params)
    assert out.shape == (B,)
    # bf16 matmul operands (f32 accumulation): loosened tolerance vs f32 ref.
    assert jnp.allclose(out, ref, atol=2e-2, rtol=0.0), (out, ref)

    # Multi-program, non-divisible batch (exercises tiled + masked writeback).
    B2 = 300
    x2 = jax.random.normal(kx2, (B2, n_type), jnp.float32)
    out2 = jax.block_until_ready(scorer_forward(x2, params))
    ref2 = scorer_reference(x2, params)
    assert out2.shape == (B2,)
    assert jnp.allclose(out2, ref2, atol=2e-2, rtol=0.0)

    print("KERNEL_OK")
</pallas_src>

<mosaic_0001>
module attributes {stable_mosaic.version = 11 : i64} {
  func.func @_scorer_kernel(%arg0: i32, %arg1: memref<8x32xf32, #tpu.memory_space<vmem>>, %arg2: memref<128x32xbf16, #tpu.memory_space<vmem>>, %arg3: memref<128x1xf32, #tpu.memory_space<vmem>>, %arg4: memref<256x128xbf16, #tpu.memory_space<vmem>>, %arg5: memref<256x1xf32, #tpu.memory_space<vmem>>, %arg6: memref<128x256xbf16, #tpu.memory_space<vmem>>, %arg7: memref<128x1xf32, #tpu.memory_space<vmem>>, %arg8: memref<128x1xf32, #tpu.memory_space<vmem>>, %arg9: memref<1x1xf32, #tpu.memory_space<vmem>>, %arg10: memref<1x8xf32, #tpu.memory_space<vmem>>) attributes {dimension_semantics = [#tpu.dimension_semantics<parallel>], iteration_bounds = array<i64: 1>, scalar_prefetch = 0 : i64, scratch_operands = 0 : i64, tpu.core_type = #tpu.core_type<tc>, window_params = [{transform_indices = @transform_0, window_bounds = array<i64: 8, 32>}, {pipeline_mode = #tpu.pipeline_mode<synchronous>, transform_indices = @transform_1, window_bounds = array<i64: 128, 32>}, {pipeline_mode = #tpu.pipeline_mode<synchronous>, transform_indices = @transform_2, window_bounds = array<i64: 128, 1>}, {pipeline_mode = #tpu.pipeline_mode<synchronous>, transform_indices = @transform_3, window_bounds = array<i64: 256, 128>}, {pipeline_mode = #tpu.pipeline_mode<synchronous>, transform_indices = @transform_4, window_bounds = array<i64: 256, 1>}, {pipeline_mode = #tpu.pipeline_mode<synchronous>, transform_indices = @transform_5, window_bounds = array<i64: 128, 256>}, {pipeline_mode = #tpu.pipeline_mode<synchronous>, transform_indices = @transform_6, window_bounds = array<i64: 128, 1>}, {pipeline_mode = #tpu.pipeline_mode<synchronous>, transform_indices = @transform_7, window_bounds = array<i64: 128, 1>}, {pipeline_mode = #tpu.pipeline_mode<synchronous>, transform_indices = @transform_8, window_bounds = array<i64: 1, 1>}, {transform_indices = @transform_9, window_bounds = array<i64: 1, 8>}]} {
    %c0 = arith.constant 0 : index
    %c0_0 = arith.constant 0 : index
    %0 = vector.load %arg1[%c0, %c0_0] : memref<8x32xf32, #tpu.memory_space<vmem>>, vector<8x32xf32>
    %1 = arith.truncf %0 : vector<8x32xf32> to vector<8x32xbf16>
    %c0_1 = arith.constant 0 : index
    %c0_2 = arith.constant 0 : index
    %2 = vector.load %arg2[%c0_1, %c0_2] : memref<128x32xbf16, #tpu.memory_space<vmem>>, vector<128x32xbf16>
    %cst = arith.constant dense<0.000000e+00> : vector<128x8xf32>
    %3 = tpu.matmul %2, %1, %cst {dimension_numbers = #tpu.dot_dimension_numbers<[1], [1], [0], [0], [0, 0, 1, 0], [], []>} : vector<128x32xbf16>, vector<8x32xbf16>, vector<128x8xf32> -> vector<128x8xf32>
    %c0_3 = arith.constant 0 : index
    %c0_4 = arith.constant 0 : index
    %4 = vector.load %arg3[%c0_3, %c0_4] : memref<128x1xf32, #tpu.memory_space<vmem>>, vector<128x1xf32>
    %5 = vector.broadcast %4 : vector<128x1xf32> to vector<128x8xf32>
    %6 = arith.addf %3, %5 : vector<128x8xf32>
    %cst_5 = arith.constant 0.000000e+00 : f32
    %7 = vector.broadcast %cst_5 : f32 to vector<128x8xf32>
    %8 = arith.maximumf %6, %7 : vector<128x8xf32>
    %c0_6 = arith.constant 0 : index
    %c0_7 = arith.constant 0 : index
    %9 = vector.load %arg4[%c0_6, %c0_7] : memref<256x128xbf16, #tpu.memory_space<vmem>>, vector<256x128xbf16>
    %10 = arith.truncf %8 : vector<128x8xf32> to vector<128x8xbf16>
    %cst_8 = arith.constant dense<0.000000e+00> : vector<256x8xf32>
    %11 = tpu.matmul %9, %10, %cst_8 {dimension_numbers = #tpu.dot_dimension_numbers<[1], [0], [0], [1], [0, 0, 1, 1], [], []>} : vector<256x128xbf16>, vector<128x8xbf16>, vector<256x8xf32> -> vector<256x8xf32>
    %c0_9 = arith.constant 0 : index
    %c0_10 = arith.constant 0 : index
    %12 = vector.load %arg5[%c0_9, %c0_10] : memref<256x1xf32, #tpu.memory_space<vmem>>, vector<256x1xf32>
    %13 = vector.broadcast %12 : vector<256x1xf32> to vector<256x8xf32>
    %14 = arith.addf %11, %13 : vector<256x8xf32>
    %cst_11 = arith.constant 0.000000e+00 : f32
    %15 = vector.broadcast %cst_11 : f32 to vector<256x8xf32>
    %16 = arith.maximumf %14, %15 : vector<256x8xf32>
    %c0_12 = arith.constant 0 : index
    %c0_13 = arith.constant 0 : index
    %17 = vector.load %arg6[%c0_12, %c0_13] : memref<128x256xbf16, #tpu.memory_space<vmem>>, vector<128x256xbf16>
    %18 = arith.truncf %16 : vector<256x8xf32> to vector<256x8xbf16>
    %cst_14 = arith.constant dense<0.000000e+00> : vector<128x8xf32>
    %19 = tpu.matmul %17, %18, %cst_14 {dimension_numbers = #tpu.dot_dimension_numbers<[1], [0], [0], [1], [0, 0, 1, 1], [], []>} : vector<128x256xbf16>, vector<256x8xbf16>, vector<128x8xf32> -> vector<128x8xf32>
    %c0_15 = arith.constant 0 : index
    %c0_16 = arith.constant 0 : index
    %20 = vector.load %arg7[%c0_15, %c0_16] : memref<128x1xf32, #tpu.memory_space<vmem>>, vector<128x1xf32>
    %21 = vector.broadcast %20 : vector<128x1xf32> to vector<128x8xf32>
    %22 = arith.addf %19, %21 : vector<128x8xf32>
    %cst_17 = arith.constant 0.000000e+00 : f32
    %23 = vector.broadcast %cst_17 : f32 to vector<128x8xf32>
    %24 = arith.maximumf %22, %23 : vector<128x8xf32>
    %c0_18 = arith.constant 0 : index
    %c0_19 = arith.constant 0 : index
    %25 = vector.load %arg8[%c0_18, %c0_19] : memref<128x1xf32, #tpu.memory_space<vmem>>, vector<128x1xf32>
    %26 = vector.broadcast %25 : vector<128x1xf32> to vector<128x8xf32>
    %27 = arith.mulf %26, %24 : vector<128x8xf32>
    %cst_20 = arith.constant dense<0.000000e+00> : vector<8xf32>
    %28 = vector.multi_reduction <add>, %27, %cst_20 [0] : vector<128x8xf32> to vector<8xf32>
    %29 = vector.shape_cast %28 : vector<8xf32> to vector<1x8xf32>
    %c0_21 = arith.constant 0 : index
    %c0_22 = arith.constant 0 : index
    %30 = vector.load %arg9[%c0_21, %c0_22] : memref<1x1xf32, #tpu.memory_space<vmem>>, vector<1x1xf32>
    %31 = vector.broadcast %30 : vector<1x1xf32> to vector<1x8xf32>
    %32 = arith.addf %29, %31 : vector<1x8xf32>
    %33 = arith.negf %32 : vector<1x8xf32>
    %34 = math.exp %33 : vector<1x8xf32>
    %cst_23 = arith.constant 1.000000e+00 : f32
    %35 = vector.broadcast %cst_23 : f32 to vector<1x8xf32>
    %36 = arith.addf %35, %34 : vector<1x8xf32>
    %37 = arith.divf %35, %36 : vector<1x8xf32>
    %c0_24 = arith.constant 0 : index
    %c0_25 = arith.constant 0 : index
    %38 = vector.load %arg10[%c0_24, %c0_25] : memref<1x8xf32, #tpu.memory_space<vmem>>, vector<1x8xf32>
    tpu.vector_store %arg10[%c0_24, %c0_25], %37 {strides = array<i32>} : memref<1x8xf32, #tpu.memory_space<vmem>>, vector<1x8xf32>,
    return
  }
  func.func @transform_0(%arg0: i32) -> (i32, i32) {
    %c0_i32 = arith.constant 0 : i32
    %c0_i32_0 = arith.constant 0 : i32
    return %arg0, %c0_i32 : i32, i32
  }
  func.func @transform_1(%arg0: i32) -> (i32, i32) {
    %c0_i32 = arith.constant 0 : i32
    %c0_i32_0 = arith.constant 0 : i32
    %c0_i32_1 = arith.constant 0 : i32
    return %c0_i32, %c0_i32_0 : i32, i32
  }
  func.func @transform_2(%arg0: i32) -> (i32, i32) {
    %c0_i32 = arith.constant 0 : i32
    %c0_i32_0 = arith.constant 0 : i32
    %c0_i32_1 = arith.constant 0 : i32
    return %c0_i32, %c0_i32_0 : i32, i32
  }
  func.func @transform_3(%arg0: i32) -> (i32, i32) {
    %c0_i32 = arith.constant 0 : i32
    %c0_i32_0 = arith.constant 0 : i32
    %c0_i32_1 = arith.constant 0 : i32
    return %c0_i32, %c0_i32_0 : i32, i32
  }
  func.func @transform_4(%arg0: i32) -> (i32, i32) {
    %c0_i32 = arith.constant 0 : i32
    %c0_i32_0 = arith.constant 0 : i32
    %c0_i32_1 = arith.constant 0 : i32
    return %c0_i32, %c0_i32_0 : i32, i32
  }
  func.func @transform_5(%arg0: i32) -> (i32, i32) {
    %c0_i32 = arith.constant 0 : i32
    %c0_i32_0 = arith.constant 0 : i32
    %c0_i32_1 = arith.constant 0 : i32
    return %c0_i32, %c0_i32_0 : i32, i32
  }
  func.func @transform_6(%arg0: i32) -> (i32, i32) {
    %c0_i32 = arith.constant 0 : i32
    %c0_i32_0 = arith.constant 0 : i32
    %c0_i32_1 = arith.constant 0 : i32
    return %c0_i32, %c0_i32_0 : i32, i32
  }
  func.func @transform_7(%arg0: i32) -> (i32, i32) {
    %c0_i32 = arith.constant 0 : i32
    %c0_i32_0 = arith.constant 0 : i32
    %c0_i32_1 = arith.constant 0 : i32
    return %c0_i32, %c0_i32_0 : i32, i32
  }
  func.func @transform_8(%arg0: i32) -> (i32, i32) {
    %c0_i32 = arith.constant 0 : i32
    %c0_i32_0 = arith.constant 0 : i32
    %c0_i32_1 = arith.constant 0 : i32
    return %c0_i32, %c0_i32_0 : i32, i32
  }
  func.func @transform_9(%arg0: i32) -> (i32, i32) {
    %c0_i32 = arith.constant 0 : i32
    %c0_i32_0 = arith.constant 0 : i32
    return %c0_i32, %arg0 : i32, i32
  }
}

</mosaic_0001>

<llo_original>
// kernel: tpu_custom_call.1
$region0: #{tpu_custom_call.1}
  #allocation0 [shape = 'u32[]', space=smem, size = 0x4, offset = 0x4, fixed_abs, tag = 'smem constant byte address 0x4 - core index']
  #allocation1 [shape = 'u32[72,128]{1,0:T(1,128)}', space=vmem, size = 0x9000, scoped, tag = 'internal scratch']
  #allocation2 [shape = 'f32[1,1]{1,0:T(1,128)S(1)}', space=vmem, size = 0x200, scoped, tag = 'scoped memory for tpu_custom_call.1']
  %s0 = inlined_call_operand.vmem [shape: f32[8,32], index: 0, kind: input, shape index: {}]
  %s1 = inlined_call_operand.vmem [shape: bf16[128,32], index: 1, kind: input, shape index: {}]
  %s2 = inlined_call_operand.vmem [shape: f32[128,1], index: 2, kind: input, shape index: {}]
  %s3 = inlined_call_operand.vmem [shape: bf16[256,128], index: 3, kind: input, shape index: {}]
  %s4 = inlined_call_operand.vmem [shape: f32[256,1], index: 4, kind: input, shape index: {}]
  %s5 = inlined_call_operand.vmem [shape: bf16[128,256], index: 5, kind: input, shape index: {}]
  %s6 = inlined_call_operand.vmem [shape: f32[128,1], index: 6, kind: input, shape index: {}]
  %s7 = inlined_call_operand.vmem [shape: f32[128,1], index: 7, kind: input, shape index: {}]
  %s8 = inlined_call_operand.<no memory space> [shape: f32[1,1], index: 8, kind: input, shape index: {}]
  %s9 = inlined_call_operand.hbm [shape: f32[1,8], index: 9, kind: output, shape index: {}]
  %s10 = sld [smem:[#allocation0]]
  $region46: #{tpu_custom_call.1} parent=0
    _
  %s12 = ssub.s32 1, %s10
  %s13 = scalar_select 0, %s12, %s10
  %v14 = vstv %s8
  %15 = vst [vmem:[#allocation2] sm:$0x1] %v14
  $region1: #{tpu_custom_call.1} parent=0
    #allocation3 [shape = 'u8[512]{0}', space=vmem, size = 0x400, scoped, tag = 'output window, operand 0, single buffered']
    #allocation4 [shape = 's32[1]{0}', space=sflag, size = 0x4, scoped, tag = 'scoped memory for tpu_custom_call.1']
    %16 = vsyncpa [#allocation4], 0
    // Predicated region
    $region2: #{tpu_custom_call.1} parent=1 // pred_check
      _
    $region3: #{tpu_custom_call.1} parent=1 // pred_check_branch
      %18 = sbr.rel (0) target = $region5
    $region4: #{tpu_custom_call.1} parent=1 // pred_region
      _
    $region5: #{tpu_custom_call.1} parent=1 // pred_fallthru
      _
    // Predicated region
    $region6: #{tpu_custom_call.1} parent=1 // pred_check
      _
    $region7: #{tpu_custom_call.1} parent=1 // pred_check_branch
      %20 = sbr.rel (0) target = $region9
    $region8: #{tpu_custom_call.1} parent=1 // pred_region
      _
    $region9: #{tpu_custom_call.1} parent=1 // pred_fallthru
      _
    // Predicated region
    $region10: #{tpu_custom_call.1} parent=1 // pred_check
      _
    $region11: #{tpu_custom_call.1} parent=1 // pred_check_branch
      %22 = sbr.rel (0) target = $region13
    $region12: #{tpu_custom_call.1} parent=1 // pred_region
      _
    $region13: #{tpu_custom_call.1} parent=1 // pred_fallthru
      _
    // Predicated region
    $region14: #{tpu_custom_call.1} parent=1 // pred_check
      _
    $region15: #{tpu_custom_call.1} parent=1 // pred_check_branch
      %24 = sbr.rel (0) target = $region17
    $region16: #{tpu_custom_call.1} parent=1 // pred_region
      _
    $region17: #{tpu_custom_call.1} parent=1 // pred_fallthru
      _
    // Predicated region
    $region18: #{tpu_custom_call.1} parent=1 // pred_check
      _
    $region19: #{tpu_custom_call.1} parent=1 // pred_check_branch
      %26 = sbr.rel (0) target = $region21
    $region20: #{tpu_custom_call.1} parent=1 // pred_region
      _
    $region21: #{tpu_custom_call.1} parent=1 // pred_fallthru
      _
    // Predicated region
    $region22: #{tpu_custom_call.1} parent=1 // pred_check
      _
    $region23: #{tpu_custom_call.1} parent=1 // pred_check_branch
      %28 = sbr.rel (0) target = $region25
    $region24: #{tpu_custom_call.1} parent=1 // pred_region
      _
    $region25: #{tpu_custom_call.1} parent=1 // pred_fallthru
      _
    // Predicated region
    $region26: #{tpu_custom_call.1} parent=1 // pred_check
      _
    $region27: #{tpu_custom_call.1} parent=1 // pred_check_branch
      %30 = sbr.rel (0) target = $region29
    $region28: #{tpu_custom_call.1} parent=1 // pred_region
      _
    $region29: #{tpu_custom_call.1} parent=1 // pred_fallthru
      _
    // Predicated region
    $region30: #{tpu_custom_call.1} parent=1 // pred_check
      _
    $region31: #{tpu_custom_call.1} parent=1 // pred_check_branch
      %32 = sbr.rel (0) target = $region33
    $region32: #{tpu_custom_call.1} parent=1 // pred_region
      _
    $region33: #{tpu_custom_call.1} parent=1 // pred_fallthru
      _
    // Predicated region
    $region34: #{tpu_custom_call.1} parent=1 // pred_check
      _
    $region35: #{tpu_custom_call.1} parent=1 // pred_check_branch
      %34 = sbr.rel (0) target = $region37
    $region36: #{tpu_custom_call.1} parent=1 // pred_region
      _
    $region37: #{tpu_custom_call.1} parent=1 // pred_fallthru
      _
    %v36 = vld [vmem:[%s0] sm:$0xff]
    %v37 = vpack.c.bf16 %v36, %v36
    %v38 = vld [vmem:[%s1] sm:$0xf]
    %v39 = vld [vmem:[%s1 + $0x4] sm:$0xf]
    %v40 = vld [vmem:[%s1 + $0x8] sm:$0xf]
    %v41 = vld [vmem:[%s1 + $0xc] sm:$0xf]
    %v42 = vld [vmem:[%s1 + $0x10] sm:$0xf]
    %v43 = vld [vmem:[%s1 + $0x14] sm:$0xf]
    %v44 = vld [vmem:[%s1 + $0x18] sm:$0xf]
    %v45 = vld [vmem:[%s1 + $0x1c] sm:$0xf]
    %v46 = vld [vmem:[%s1 + $0x20] sm:$0xf]
    %v47 = vld [vmem:[%s1 + $0x24] sm:$0xf]
    %v48 = vld [vmem:[%s1 + $0x28] sm:$0xf]
    %v49 = vld [vmem:[%s1 + $0x2c] sm:$0xf]
    %v50 = vld [vmem:[%s1 + $0x30] sm:$0xf]
    %v51 = vld [vmem:[%s1 + $0x34] sm:$0xf]
    %v52 = vld [vmem:[%s1 + $0x38] sm:$0xf]
    %v53 = vld [vmem:[%s1 + $0x3c] sm:$0xf]
    %v54 = vld [vmem:[%s2] sm:$0xff]
    %v55 = vld [vmem:[%s2 + $0x8] sm:$0xff]
    %v56 = vld [vmem:[%s2 + $0x10] sm:$0xff]
    %v57 = vld [vmem:[%s2 + $0x18] sm:$0xff]
    %v58 = vld [vmem:[%s2 + $0x20] sm:$0xff]
    %v59 = vld [vmem:[%s2 + $0x28] sm:$0xff]
    %v60 = vld [vmem:[%s2 + $0x30] sm:$0xff]
    %v61 = vld [vmem:[%s2 + $0x38] sm:$0xff]
    %v62 = vld [vmem:[%s2 + $0x40] sm:$0xff]
    %v63 = vld [vmem:[%s2 + $0x48] sm:$0xff]
    %v64 = vld [vmem:[%s2 + $0x50] sm:$0xff]
    %v65 = vld [vmem:[%s2 + $0x58] sm:$0xff]
    %v66 = vld [vmem:[%s2 + $0x60] sm:$0xff]
    %v67 = vld [vmem:[%s2 + $0x68] sm:$0xff]
    %v68 = vld [vmem:[%s2 + $0x70] sm:$0xff]
    %v69 = vld [vmem:[%s2 + $0x78] sm:$0xff]
    %71 = vset.pattern.permute.xlu0 0
    %72 = vperm.xlu0 %71, %v54
    %v73 = vpop.permute.xlu0 %72
    %76 = vset.pattern.permute.xlu0 0
    %77 = vperm.xlu0 %76, %v55
    %v78 = vpop.permute.xlu0 %77
    %81 = vset.pattern.permute.xlu0 0
    %82 = vperm.xlu0 %81, %v56
    %v83 = vpop.permute.xlu0 %82
    %86 = vset.pattern.permute.xlu0 0
    %87 = vperm.xlu0 %86, %v57
    %v88 = vpop.permute.xlu0 %87
    %91 = vset.pattern.permute.xlu0 0
    %92 = vperm.xlu0 %91, %v58
    %v93 = vpop.permute.xlu0 %92
    %96 = vset.pattern.permute.xlu0 0
    %97 = vperm.xlu0 %96, %v59
    %v98 = vpop.permute.xlu0 %97
    %101 = vset.pattern.permute.xlu0 0
    %102 = vperm.xlu0 %101, %v60
    %v103 = vpop.permute.xlu0 %102
    %106 = vset.pattern.permute.xlu0 0
    %107 = vperm.xlu0 %106, %v61
    %v108 = vpop.permute.xlu0 %107
    %111 = vset.pattern.permute.xlu0 0
    %112 = vperm.xlu0 %111, %v62
    %v113 = vpop.permute.xlu0 %112
    %116 = vset.pattern.permute.xlu0 0
    %117 = vperm.xlu0 %116, %v63
    %v118 = vpop.permute.xlu0 %117
    %121 = vset.pattern.permute.xlu0 0
    %122 = vperm.xlu0 %121, %v64
    %v123 = vpop.permute.xlu0 %122
    %126 = vset.pattern.permute.xlu0 0
    %127 = vperm.xlu0 %126, %v65
    %v128 = vpop.permute.xlu0 %127
    %131 = vset.pattern.permute.xlu0 0
    %132 = vperm.xlu0 %131, %v66
    %v133 = vpop.permute.xlu0 %132
    %136 = vset.pattern.permute.xlu0 0
    %137 = vperm.xlu0 %136, %v67
    %v138 = vpop.permute.xlu0 %137
    %141 = vset.pattern.permute.xlu0 0
    %142 = vperm.xlu0 %141, %v68
    %v143 = vpop.permute.xlu0 %142
    %146 = vset.pattern.permute.xlu0 0
    %147 = vperm.xlu0 %146, %v69
    %v148 = vpop.permute.xlu0 %147
    %v166 = vunpack.c.l.b16 %v38
    %v167 = vunpack.c.l.b16 %v39
    %v168 = vunpack.c.l.b16 %v40
    %v169 = vunpack.c.l.b16 %v41
    %v170 = vunpack.c.l.b16 %v42
    %v171 = vunpack.c.l.b16 %v43
    %v172 = vunpack.c.l.b16 %v44
    %v173 = vunpack.c.l.b16 %v45
    %v174 = vunpack.c.l.b16 %v46
    %v175 = vunpack.c.l.b16 %v47
    %v176 = vunpack.c.l.b16 %v48
    %v177 = vunpack.c.l.b16 %v49
    %v178 = vunpack.c.l.b16 %v50
    %v179 = vunpack.c.l.b16 %v51
    %v180 = vunpack.c.l.b16 %v52
    %v181 = vunpack.c.l.b16 %v53
    %v182 = vpack.c.b16 %v167, %v166
    %v183 = vpack.c.b16 %v169, %v168
    %v184 = vpack.c.b16 %v171, %v170
    %v185 = vpack.c.b16 %v173, %v172
    %v186 = vpack.c.b16 %v175, %v174
    %v187 = vpack.c.b16 %v177, %v176
    %v188 = vpack.c.b16 %v179, %v178
    %v189 = vpack.c.b16 %v181, %v180
    %vm190 = vcmask 261120
    %v192 = vsel %vm190, %v182, 0
    %v195 = vsel %vm190, %v183, 0
    %v198 = vsel %vm190, %v184, 0
    %v201 = vsel %vm190, %v185, 0
    %v204 = vsel %vm190, %v186, 0
    %v207 = vsel %vm190, %v187, 0
    %v210 = vsel %vm190, %v188, 0
    %v213 = vsel %vm190, %v189, 0
    %v216 = vsel %vm190, %v37, 0
    %218 = vmatpush.bf16.xpose.msra.mxu0 0
    %219 = vmatpush.bf16.xpose.msra.mxu0 0
    %220 = vmatpush.bf16.xpose.msra.mxu0 0
    %221 = vmatpush.bf16.xpose.msra.mxu0 0
    %222 = vmatpush.bf16.xpose.msra.mxu0 0
    %223 = vmatpush.bf16.xpose.msra.mxu0 0
    %224 = vmatpush.bf16.xpose.msra.mxu0 0
    %225 = vmatpush.bf16.xpose.msra.mxu0 %v216
    %226 = vmatmul.bf16.gmra.mxu0 %v192
    %v227 = vpop.f32.mrf.mxu0
    %v228 = vadd.f32 %v73, %v227
    %v229 = vpop.f32.mrf.mxu0
    %v230 = vadd.f32 %v78, %v229
    %231 = vmatmul.bf16.gmra.mxu0 %v195
    %v232 = vpop.f32.mrf.mxu0
    %v233 = vadd.f32 %v83, %v232
    %v234 = vpop.f32.mrf.mxu0
    %v235 = vadd.f32 %v88, %v234
    %236 = vmatmul.bf16.gmra.mxu0 %v198
    %v237 = vpop.f32.mrf.mxu0
    %v238 = vadd.f32 %v93, %v237
    %v239 = vpop.f32.mrf.mxu0
    %v240 = vadd.f32 %v98, %v239
    %241 = vmatmul.bf16.gmra.mxu0 %v201
    %v242 = vpop.f32.mrf.mxu0
    %v243 = vadd.f32 %v103, %v242
    %v244 = vpop.f32.mrf.mxu0
    %v245 = vadd.f32 %v108, %v244
    %246 = vmatmul.bf16.gmra.mxu0 %v204
    %v247 = vpop.f32.mrf.mxu0
    %v248 = vadd.f32 %v113, %v247
    %v249 = vpop.f32.mrf.mxu0
    %v250 = vadd.f32 %v118, %v249
    %251 = vmatmul.bf16.gmra.mxu0 %v207
    %v252 = vpop.f32.mrf.mxu0
    %v253 = vadd.f32 %v123, %v252
    %v254 = vpop.f32.mrf.mxu0
    %v255 = vadd.f32 %v128, %v254
    %256 = vmatmul.bf16.gmra.mxu0 %v210
    %v257 = vpop.f32.mrf.mxu0
    %v258 = vadd.f32 %v133, %v257
    %v259 = vpop.f32.mrf.mxu0
    %v260 = vadd.f32 %v138, %v259
    %261 = vmatmul.bf16.gmra.mxu0 %v213
    %v262 = vpop.f32.mrf.mxu0
    %v263 = vadd.f32 %v143, %v262
    %v264 = vpop.f32.mrf.mxu0
    %v265 = vadd.f32 %v148, %v264
    %266 = vdwg.mxu0
    %v267 = vmax.f32 %v228, 0.0
    %v268 = vmax.f32 %v230, 0.0
    %v269 = vmax.f32 %v233, 0.0
    %v270 = vmax.f32 %v235, 0.0
    %v271 = vmax.f32 %v238, 0.0
    %v272 = vmax.f32 %v240, 0.0
    %v273 = vmax.f32 %v243, 0.0
    %v274 = vmax.f32 %v245, 0.0
    %v275 = vmax.f32 %v248, 0.0
    %v276 = vmax.f32 %v250, 0.0
    %v277 = vmax.f32 %v253, 0.0
    %v278 = vmax.f32 %v255, 0.0
    %v279 = vmax.f32 %v258, 0.0
    %v280 = vmax.f32 %v260, 0.0
    %v281 = vmax.f32 %v263, 0.0
    %v282 = vmax.f32 %v265, 0.0
    %v283 = vld [vmem:[%s3] sm:$0xf]
    %v284 = vld [vmem:[%s3 + $0x4] sm:$0xf]
    %v285 = vld [vmem:[%s3 + $0x8] sm:$0xf]
    %v286 = vld [vmem:[%s3 + $0xc] sm:$0xf]
    %v287 = vld [vmem:[%s3 + $0x10] sm:$0xf]
    %v288 = vld [vmem:[%s3 + $0x14] sm:$0xf]
    %v289 = vld [vmem:[%s3 + $0x18] sm:$0xf]
    %v290 = vld [vmem:[%s3 + $0x1c] sm:$0xf]
    %v291 = vld [vmem:[%s3 + $0x20] sm:$0xf]
    %v292 = vld [vmem:[%s3 + $0x24] sm:$0xf]
    %v293 = vld [vmem:[%s3 + $0x28] sm:$0xf]
    %v294 = vld [vmem:[%s3 + $0x2c] sm:$0xf]
    %v295 = vld [vmem:[%s3 + $0x30] sm:$0xf]
    %v296 = vld [vmem:[%s3 + $0x34] sm:$0xf]
    %v297 = vld [vmem:[%s3 + $0x38] sm:$0xf]
    %v298 = vld [vmem:[%s3 + $0x3c] sm:$0xf]
    %v299 = vld [vmem:[%s3 + $0x40] sm:$0xf]
    %v300 = vld [vmem:[%s3 + $0x44] sm:$0xf]
    %v301 = vld [vmem:[%s3 + $0x48] sm:$0xf]
    %v302 = vld [vmem:[%s3 + $0x4c] sm:$0xf]
    %v303 = vld [vmem:[%s3 + $0x50] sm:$0xf]
    %v304 = vld [vmem:[%s3 + $0x54] sm:$0xf]
    %v305 = vld [vmem:[%s3 + $0x58] sm:$0xf]
    %v306 = vld [vmem:[%s3 + $0x5c] sm:$0xf]
    %v307 = vld [vmem:[%s3 + $0x60] sm:$0xf]
    %v308 = vld [vmem:[%s3 + $0x64] sm:$0xf]
    %v309 = vld [vmem:[%s3 + $0x68] sm:$0xf]
    %v310 = vld [vmem:[%s3 + $0x6c] sm:$0xf]
    %v311 = vld [vmem:[%s3 + $0x70] sm:$0xf]
    %v312 = vld [vmem:[%s3 + $0x74] sm:$0xf]
    %v313 = vld [vmem:[%s3 + $0x78] sm:$0xf]
    %v314 = vld [vmem:[%s3 + $0x7c] sm:$0xf]
    %v315 = vpack.c.bf16 %v268, %v267
    %v316 = vpack.c.bf16 %v270, %v269
    %v317 = vpack.c.bf16 %v272, %v271
    %v318 = vpack.c.bf16 %v274, %v273
    %v319 = vpack.c.bf16 %v276, %v275
    %v320 = vpack.c.bf16 %v278, %v277
    %v321 = vpack.c.bf16 %v280, %v279
    %v322 = vpack.c.bf16 %v282, %v281
    %v323 = vld [vmem:[%s4] sm:$0xff]
    %v324 = vld [vmem:[%s4 + $0x8] sm:$0xff]
    %v325 = vld [vmem:[%s4 + $0x10] sm:$0xff]
    %v326 = vld [vmem:[%s4 + $0x18] sm:$0xff]
    %v327 = vld [vmem:[%s4 + $0x20] sm:$0xff]
    %v328 = vld [vmem:[%s4 + $0x28] sm:$0xff]
    %v329 = vld [vmem:[%s4 + $0x30] sm:$0xff]
    %v330 = vld [vmem:[%s4 + $0x38] sm:$0xff]
    %v331 = vld [vmem:[%s4 + $0x40] sm:$0xff]
    %v332 = vld [vmem:[%s4 + $0x48] sm:$0xff]
    %v333 = vld [vmem:[%s4 + $0x50] sm:$0xff]
    %v334 = vld [vmem:[%s4 + $0x58] sm:$0xff]
    %v335 = vld [vmem:[%s4 + $0x60] sm:$0xff]
    %v336 = vld [vmem:[%s4 + $0x68] sm:$0xff]
    %v337 = vld [vmem:[%s4 + $0x70] sm:$0xff]
    %v338 = vld [vmem:[%s4 + $0x78] sm:$0xff]
    %v339 = vld [vmem:[%s4 + $0x80] sm:$0xff]
    %v340 = vld [vmem:[%s4 + $0x88] sm:$0xff]
    %v341 = vld [vmem:[%s4 + $0x90] sm:$0xff]
    %v342 = vld [vmem:[%s4 + $0x98] sm:$0xff]
    %v343 = vld [vmem:[%s4 + $0xa0] sm:$0xff]
    %v344 = vld [vmem:[%s4 + $0xa8] sm:$0xff]
    %v345 = vld [vmem:[%s4 + $0xb0] sm:$0xff]
    %v346 = vld [vmem:[%s4 + $0xb8] sm:$0xff]
    %v347 = vld [vmem:[%s4 + $0xc0] sm:$0xff]
    %v348 = vld [vmem:[%s4 + $0xc8] sm:$0xff]
    %v349 = vld [vmem:[%s4 + $0xd0] sm:$0xff]
    %v350 = vld [vmem:[%s4 + $0xd8] sm:$0xff]
    %v351 = vld [vmem:[%s4 + $0xe0] sm:$0xff]
    %v352 = vld [vmem:[%s4 + $0xe8] sm:$0xff]
    %v353 = vld [vmem:[%s4 + $0xf0] sm:$0xff]
    %v354 = vld [vmem:[%s4 + $0xf8] sm:$0xff]
    %356 = vset.pattern.permute.xlu0 0
    %357 = vperm.xlu0 %356, %v323
    %v358 = vpop.permute.xlu0 %357
    %361 = vset.pattern.permute.xlu0 0
    %362 = vperm.xlu0 %361, %v324
    %v363 = vpop.permute.xlu0 %362
    %366 = vset.pattern.permute.xlu0 0
    %367 = vperm.xlu0 %366, %v325
    %v368 = vpop.permute.xlu0 %367
    %371 = vset.pattern.permute.xlu0 0
    %372 = vperm.xlu0 %371, %v326
    %v373 = vpop.permute.xlu0 %372
    %376 = vset.pattern.permute.xlu0 0
    %377 = vperm.xlu0 %376, %v327
    %v378 = vpop.permute.xlu0 %377
    %381 = vset.pattern.permute.xlu0 0
    %382 = vperm.xlu0 %381, %v328
    %v383 = vpop.permute.xlu0 %382
    %386 = vset.pattern.permute.xlu0 0
    %387 = vperm.xlu0 %386, %v329
    %v388 = vpop.permute.xlu0 %387
    %391 = vset.pattern.permute.xlu0 0
    %392 = vperm.xlu0 %391, %v330
    %v393 = vpop.permute.xlu0 %392
    %396 = vset.pattern.permute.xlu0 0
    %397 = vperm.xlu0 %396, %v331
    %v398 = vpop.permute.xlu0 %397
    %401 = vset.pattern.permute.xlu0 0
    %402 = vperm.xlu0 %401, %v332
    %v403 = vpop.permute.xlu0 %402
    %406 = vset.pattern.permute.xlu0 0
    %407 = vperm.xlu0 %406, %v333
    %v408 = vpop.permute.xlu0 %407
    %411 = vset.pattern.permute.xlu0 0
    %412 = vperm.xlu0 %411, %v334
    %v413 = vpop.permute.xlu0 %412
    %416 = vset.pattern.permute.xlu0 0
    %417 = vperm.xlu0 %416, %v335
    %v418 = vpop.permute.xlu0 %417
    %421 = vset.pattern.permute.xlu0 0
    %422 = vperm.xlu0 %421, %v336
    %v423 = vpop.permute.xlu0 %422
    %426 = vset.pattern.permute.xlu0 0
    %427 = vperm.xlu0 %426, %v337
    %v428 = vpop.permute.xlu0 %427
    %431 = vset.pattern.permute.xlu0 0
    %432 = vperm.xlu0 %431, %v338
    %v433 = vpop.permute.xlu0 %432
    %436 = vset.pattern.permute.xlu0 0
    %437 = vperm.xlu0 %436, %v339
    %v438 = vpop.permute.xlu0 %437
    %441 = vset.pattern.permute.xlu0 0
    %442 = vperm.xlu0 %441, %v340
    %v443 = vpop.permute.xlu0 %442
    %446 = vset.pattern.permute.xlu0 0
    %447 = vperm.xlu0 %446, %v341
    %v448 = vpop.permute.xlu0 %447
    %451 = vset.pattern.permute.xlu0 0
    %452 = vperm.xlu0 %451, %v342
    %v453 = vpop.permute.xlu0 %452
    %456 = vset.pattern.permute.xlu0 0
    %457 = vperm.xlu0 %456, %v343
    %v458 = vpop.permute.xlu0 %457
    %461 = vset.pattern.permute.xlu0 0
    %462 = vperm.xlu0 %461, %v344
    %v463 = vpop.permute.xlu0 %462
    %466 = vset.pattern.permute.xlu0 0
    %467 = vperm.xlu0 %466, %v345
    %v468 = vpop.permute.xlu0 %467
    %471 = vset.pattern.permute.xlu0 0
    %472 = vperm.xlu0 %471, %v346
    %v473 = vpop.permute.xlu0 %472
    %476 = vset.pattern.permute.xlu0 0
    %477 = vperm.xlu0 %476, %v347
    %v478 = vpop.permute.xlu0 %477
    %481 = vset.pattern.permute.xlu0 0
    %482 = vperm.xlu0 %481, %v348
    %v483 = vpop.permute.xlu0 %482
    %486 = vset.pattern.permute.xlu0 0
    %487 = vperm.xlu0 %486, %v349
    %v488 = vpop.permute.xlu0 %487
    %491 = vset.pattern.permute.xlu0 0
    %492 = vperm.xlu0 %491, %v350
    %v493 = vpop.permute.xlu0 %492
    %496 = vset.pattern.permute.xlu0 0
    %497 = vperm.xlu0 %496, %v351
    %v498 = vpop.permute.xlu0 %497
    %501 = vset.pattern.permute.xlu0 0
    %502 = vperm.xlu0 %501, %v352
    %v503 = vpop.permute.xlu0 %502
    %506 = vset.pattern.permute.xlu0 0
    %507 = vperm.xlu0 %506, %v353
    %v508 = vpop.permute.xlu0 %507
    %511 = vset.pattern.permute.xlu0 0
    %512 = vperm.xlu0 %511, %v354
    %v513 = vpop.permute.xlu0 %512
    %v547 = vunpack.c.l.b16 %v283
    %v548 = vunpack.c.l.b16 %v284
    %v549 = vunpack.c.l.b16 %v285
    %v550 = vunpack.c.l.b16 %v286
    %v551 = vunpack.c.l.b16 %v287
    %v552 = vunpack.c.l.b16 %v288
    %v553 = vunpack.c.l.b16 %v289
    %v554 = vunpack.c.l.b16 %v290
    %v555 = vunpack.c.l.b16 %v291
    %v556 = vunpack.c.l.b16 %v292
    %v557 = vunpack.c.l.b16 %v293
    %v558 = vunpack.c.l.b16 %v294
    %v559 = vunpack.c.l.b16 %v295
    %v560 = vunpack.c.l.b16 %v296
    %v561 = vunpack.c.l.b16 %v297
    %v562 = vunpack.c.l.b16 %v298
    %v563 = vunpack.c.l.b16 %v299
    %v564 = vunpack.c.l.b16 %v300
    %v565 = vunpack.c.l.b16 %v301
    %v566 = vunpack.c.l.b16 %v302
    %v567 = vunpack.c.l.b16 %v303
    %v568 = vunpack.c.l.b16 %v304
    %v569 = vunpack.c.l.b16 %v305
    %v570 = vunpack.c.l.b16 %v306
    %v571 = vunpack.c.l.b16 %v307
    %v572 = vunpack.c.l.b16 %v308
    %v573 = vunpack.c.l.b16 %v309
    %v574 = vunpack.c.l.b16 %v310
    %v575 = vunpack.c.l.b16 %v311
    %v576 = vunpack.c.l.b16 %v312
    %v577 = vunpack.c.l.b16 %v313
    %v578 = vunpack.c.l.b16 %v314
    %v579 = vpack.c.b16 %v548, %v547
    %v580 = vpack.c.b16 %v550, %v549
    %v581 = vpack.c.b16 %v552, %v551
    %v582 = vpack.c.b16 %v554, %v553
    %v583 = vpack.c.b16 %v556, %v555
    %v584 = vpack.c.b16 %v558, %v557
    %v585 = vpack.c.b16 %v560, %v559
    %v586 = vpack.c.b16 %v562, %v561
    %v587 = vpack.c.b16 %v564, %v563
    %v588 = vpack.c.b16 %v566, %v565
    %v589 = vpack.c.b16 %v568, %v567
    %v590 = vpack.c.b16 %v570, %v569
    %v591 = vpack.c.b16 %v572, %v571
    %v592 = vpack.c.b16 %v574, %v573
    %v593 = vpack.c.b16 %v576, %v575
    %v594 = vpack.c.b16 %v578, %v577
    %611 = vmatpush.bf16.msra.mxu0 %v322
    %612 = vmatpush.bf16.msra.mxu0 %v321
    %613 = vmatpush.bf16.msra.mxu0 %v320
    %614 = vmatpush.bf16.msra.mxu0 %v319
    %615 = vmatpush.bf16.msra.mxu0 %v318
    %616 = vmatpush.bf16.msra.mxu0 %v317
    %617 = vmatpush.bf16.msra.mxu0 %v316
    %618 = vmatpush.bf16.msra.mxu0 %v315
    %619 = vmatmul.bf16.gmra.mxu0 %v579
    %v620 = vpop.f32.mrf.mxu0
    %v621 = vadd.f32 %v358, %v620
    %v622 = vpop.f32.mrf.mxu0
    %v623 = vadd.f32 %v363, %v622
    %624 = vmatmul.bf16.gmra.mxu0 %v580
    %v625 = vpop.f32.mrf.mxu0
    %v626 = vadd.f32 %v368, %v625
    %v627 = vpop.f32.mrf.mxu0
    %v628 = vadd.f32 %v373, %v627
    %629 = vmatmul.bf16.gmra.mxu0 %v581
    %v630 = vpop.f32.mrf.mxu0
    %v631 = vadd.f32 %v378, %v630
    %v632 = vpop.f32.mrf.mxu0
    %v633 = vadd.f32 %v383, %v632
    %634 = vmatmul.bf16.gmra.mxu0 %v582
    %v635 = vpop.f32.mrf.mxu0
    %v636 = vadd.f32 %v388, %v635
    %v637 = vpop.f32.mrf.mxu0
    %v638 = vadd.f32 %v393, %v637
    %639 = vmatmul.bf16.gmra.mxu0 %v583
    %v640 = vpop.f32.mrf.mxu0
    %v641 = vadd.f32 %v398, %v640
    %v642 = vpop.f32.mrf.mxu0
    %v643 = vadd.f32 %v403, %v642
    %644 = vmatmul.bf16.gmra.mxu0 %v584
    %v645 = vpop.f32.mrf.mxu0
    %v646 = vadd.f32 %v408, %v645
    %v647 = vpop.f32.mrf.mxu0
    %v648 = vadd.f32 %v413, %v647
    %649 = vmatmul.bf16.gmra.mxu0 %v585
    %v650 = vpop.f32.mrf.mxu0
    %v651 = vadd.f32 %v418, %v650
    %v652 = vpop.f32.mrf.mxu0
    %v653 = vadd.f32 %v423, %v652
    %654 = vmatmul.bf16.gmra.mxu0 %v586
    %v655 = vpop.f32.mrf.mxu0
    %v656 = vadd.f32 %v428, %v655
    %v657 = vpop.f32.mrf.mxu0
    %v658 = vadd.f32 %v433, %v657
    %659 = vmatmul.bf16.gmra.mxu0 %v587
    %v660 = vpop.f32.mrf.mxu0
    %v661 = vadd.f32 %v438, %v660
    %v662 = vpop.f32.mrf.mxu0
    %v663 = vadd.f32 %v443, %v662
    %664 = vmatmul.bf16.gmra.mxu0 %v588
    %v665 = vpop.f32.mrf.mxu0
    %v666 = vadd.f32 %v448, %v665
    %v667 = vpop.f32.mrf.mxu0
    %v668 = vadd.f32 %v453, %v667
    %669 = vmatmul.bf16.gmra.mxu0 %v589
    %v670 = vpop.f32.mrf.mxu0
    %v671 = vadd.f32 %v458, %v670
    %v672 = vpop.f32.mrf.mxu0
    %v673 = vadd.f32 %v463, %v672
    %674 = vmatmul.bf16.gmra.mxu0 %v590
    %v675 = vpop.f32.mrf.mxu0
    %v676 = vadd.f32 %v468, %v675
    %v677 = vpop.f32.mrf.mxu0
    %v678 = vadd.f32 %v473, %v677
    %679 = vmatmul.bf16.gmra.mxu0 %v591
    %v680 = vpop.f32.mrf.mxu0
    %v681 = vadd.f32 %v478, %v680
    %v682 = vpop.f32.mrf.mxu0
    %v683 = vadd.f32 %v483, %v682
    %684 = vmatmul.bf16.gmra.mxu0 %v592
    %v685 = vpop.f32.mrf.mxu0
    %v686 = vadd.f32 %v488, %v685
    %v687 = vpop.f32.mrf.mxu0
    %v688 = vadd.f32 %v493, %v687
    %689 = vmatmul.bf16.gmra.mxu0 %v593
    %v690 = vpop.f32.mrf.mxu0
    %v691 = vadd.f32 %v498, %v690
    %v692 = vpop.f32.mrf.mxu0
    %v693 = vadd.f32 %v503, %v692
    %694 = vmatmul.bf16.gmra.mxu0 %v594
    %v695 = vpop.f32.mrf.mxu0
    %v696 = vadd.f32 %v508, %v695
    %v697 = vpop.f32.mrf.mxu0
    %v698 = vadd.f32 %v513, %v697
    %699 = vdwg.mxu0
    %v700 = vmax.f32 %v621, 0.0
    %v701 = vmax.f32 %v623, 0.0
    %v702 = vmax.f32 %v626, 0.0
    %v703 = vmax.f32 %v628, 0.0
    %v704 = vmax.f32 %v631, 0.0
    %v705 = vmax.f32 %v633, 0.0
    %v706 = vmax.f32 %v636, 0.0
    %v707 = vmax.f32 %v638, 0.0
    %v708 = vmax.f32 %v641, 0.0
    %v709 = vmax.f32 %v643, 0.0
    %v710 = vmax.f32 %v646, 0.0
    %v711 = vmax.f32 %v648, 0.0
    %v712 = vmax.f32 %v651, 0.0
    %v713 = vmax.f32 %v653, 0.0
    %v714 = vmax.f32 %v656, 0.0
    %v715 = vmax.f32 %v658, 0.0
    %v716 = vmax.f32 %v661, 0.0
    %v717 = vmax.f32 %v663, 0.0
    %v718 = vmax.f32 %v666, 0.0
    %v719 = vmax.f32 %v668, 0.0
    %v720 = vmax.f32 %v671, 0.0
    %v721 = vmax.f32 %v673, 0.0
    %v722 = vmax.f32 %v676, 0.0
    %v723 = vmax.f32 %v678, 0.0
    %v724 = vmax.f32 %v681, 0.0
    %v725 = vmax.f32 %v683, 0.0
    %v726 = vmax.f32 %v686, 0.0
    %v727 = vmax.f32 %v688, 0.0
    %v728 = vmax.f32 %v691, 0.0
    %v729 = vmax.f32 %v693, 0.0
    %v730 = vmax.f32 %v696, 0.0
    %v731 = vmax.f32 %v698, 0.0
    %v732 = vld [vmem:[%s5] sm:$0xff]
    %v733 = vld [vmem:[%s5 + $0x8] sm:$0xff]
    %v734 = vld [vmem:[%s5 + $0x10] sm:$0xff]
    %v735 = vld [vmem:[%s5 + $0x18] sm:$0xff]
    %v736 = vld [vmem:[%s5 + $0x20] sm:$0xff]
    %v737 = vld [vmem:[%s5 + $0x28] sm:$0xff]
    %v738 = vld [vmem:[%s5 + $0x30] sm:$0xff]
    %v739 = vld [vmem:[%s5 + $0x38] sm:$0xff]
    %v740 = vld [vmem:[%s5 + $0x40] sm:$0xff]
    %v741 = vld [vmem:[%s5 + $0x48] sm:$0xff]
    %v742 = vld [vmem:[%s5 + $0x50] sm:$0xff]
    %v743 = vld [vmem:[%s5 + $0x58] sm:$0xff]
    %v744 = vld [vmem:[%s5 + $0x60] sm:$0xff]
    %v745 = vld [vmem:[%s5 + $0x68] sm:$0xff]
    %v746 = vld [vmem:[%s5 + $0x70] sm:$0xff]
    %v747 = vld [vmem:[%s5 + $0x78] sm:$0xff]
    %v748 = vpack.c.bf16 %v701, %v700
    %v749 = vpack.c.bf16 %v703, %v702
    %v750 = vpack.c.bf16 %v705, %v704
    %v751 = vpack.c.bf16 %v707, %v706
    %v752 = vpack.c.bf16 %v709, %v708
    %v753 = vpack.c.bf16 %v711, %v710
    %v754 = vpack.c.bf16 %v713, %v712
    %v755 = vpack.c.bf16 %v715, %v714
    %v756 = vpack.c.bf16 %v717, %v716
    %v757 = vpack.c.bf16 %v719, %v718
    %v758 = vpack.c.bf16 %v721, %v720
    %v759 = vpack.c.bf16 %v723, %v722
    %v760 = vpack.c.bf16 %v725, %v724
    %v761 = vpack.c.bf16 %v727, %v726
    %v762 = vpack.c.bf16 %v729, %v728
    %v763 = vpack.c.bf16 %v731, %v730
    %v764 = vld [vmem:[%s6] sm:$0xff]
    %v765 = vld [vmem:[%s6 + $0x8] sm:$0xff]
    %v766 = vld [vmem:[%s6 + $0x10] sm:$0xff]
    %v767 = vld [vmem:[%s6 + $0x18] sm:$0xff]
    %v768 = vld [vmem:[%s6 + $0x20] sm:$0xff]
    %v769 = vld [vmem:[%s6 + $0x28] sm:$0xff]
    %v770 = vld [vmem:[%s6 + $0x30] sm:$0xff]
    %v771 = vld [vmem:[%s6 + $0x38] sm:$0xff]
    %v772 = vld [vmem:[%s6 + $0x40] sm:$0xff]
    %v773 = vld [vmem:[%s6 + $0x48] sm:$0xff]
    %v774 = vld [vmem:[%s6 + $0x50] sm:$0xff]
    %v775 = vld [vmem:[%s6 + $0x58] sm:$0xff]
    %v776 = vld [vmem:[%s6 + $0x60] sm:$0xff]
    %v777 = vld [vmem:[%s6 + $0x68] sm:$0xff]
    %v778 = vld [vmem:[%s6 + $0x70] sm:$0xff]
    %v779 = vld [vmem:[%s6 + $0x78] sm:$0xff]
    %781 = vset.pattern.permute.xlu0 0
    %782 = vperm.xlu0 %781, %v764
    %v783 = vpop.permute.xlu0 %782
    %786 = vset.pattern.permute.xlu0 0
    %787 = vperm.xlu0 %786, %v765
    %v788 = vpop.permute.xlu0 %787
    %791 = vset.pattern.permute.xlu0 0
    %792 = vperm.xlu0 %791, %v766
    %v793 = vpop.permute.xlu0 %792
    %796 = vset.pattern.permute.xlu0 0
    %797 = vperm.xlu0 %796, %v767
    %v798 = vpop.permute.xlu0 %797
    %801 = vset.pattern.permute.xlu0 0
    %802 = vperm.xlu0 %801, %v768
    %v803 = vpop.permute.xlu0 %802
    %806 = vset.pattern.permute.xlu0 0
    %807 = vperm.xlu0 %806, %v769
    %v808 = vpop.permute.xlu0 %807
    %811 = vset.pattern.permute.xlu0 0
    %812 = vperm.xlu0 %811, %v770
    %v813 = vpop.permute.xlu0 %812
    %816 = vset.pattern.permute.xlu0 0
    %817 = vperm.xlu0 %816, %v771
    %v818 = vpop.permute.xlu0 %817
    %821 = vset.pattern.permute.xlu0 0
    %822 = vperm.xlu0 %821, %v772
    %v823 = vpop.permute.xlu0 %822
    %826 = vset.pattern.permute.xlu0 0
    %827 = vperm.xlu0 %826, %v773
    %v828 = vpop.permute.xlu0 %827
    %831 = vset.pattern.permute.xlu0 0
    %832 = vperm.xlu0 %831, %v774
    %v833 = vpop.permute.xlu0 %832
    %836 = vset.pattern.permute.xlu0 0
    %837 = vperm.xlu0 %836, %v775
    %v838 = vpop.permute.xlu0 %837
    %841 = vset.pattern.permute.xlu0 0
    %842 = vperm.xlu0 %841, %v776
    %v843 = vpop.permute.xlu0 %842
    %846 = vset.pattern.permute.xlu0 0
    %847 = vperm.xlu0 %846, %v777
    %v848 = vpop.permute.xlu0 %847
    %851 = vset.pattern.permute.xlu0 0
    %852 = vperm.xlu0 %851, %v778
    %v853 = vpop.permute.xlu0 %852
    %856 = vset.pattern.permute.xlu0 0
    %857 = vperm.xlu0 %856, %v779
    %v858 = vpop.permute.xlu0 %857
    %v876 = vunpack.c.l.b16 %v732
    %v877 = vunpack.c.h.b16 %v732
    %v878 = vunpack.c.l.b16 %v733
    %v879 = vunpack.c.h.b16 %v733
    %v880 = vunpack.c.l.b16 %v734
    %v881 = vunpack.c.h.b16 %v734
    %v882 = vunpack.c.l.b16 %v735
    %v883 = vunpack.c.h.b16 %v735
    %v884 = vunpack.c.l.b16 %v736
    %v885 = vunpack.c.h.b16 %v736
    %v886 = vunpack.c.l.b16 %v737
    %v887 = vunpack.c.h.b16 %v737
    %v888 = vunpack.c.l.b16 %v738
    %v889 = vunpack.c.h.b16 %v738
    %v890 = vunpack.c.l.b16 %v739
    %v891 = vunpack.c.h.b16 %v739
    %v892 = vunpack.c.l.b16 %v740
    %v893 = vunpack.c.h.b16 %v740
    %v894 = vunpack.c.l.b16 %v741
    %v895 = vunpack.c.h.b16 %v741
    %v896 = vunpack.c.l.b16 %v742
    %v897 = vunpack.c.h.b16 %v742
    %v898 = vunpack.c.l.b16 %v743
    %v899 = vunpack.c.h.b16 %v743
    %v900 = vunpack.c.l.b16 %v744
    %v901 = vunpack.c.h.b16 %v744
    %v902 = vunpack.c.l.b16 %v745
    %v903 = vunpack.c.h.b16 %v745
    %v904 = vunpack.c.l.b16 %v746
    %v905 = vunpack.c.h.b16 %v746
    %v906 = vunpack.c.l.b16 %v747
    %v907 = vunpack.c.h.b16 %v747
    %v908 = vpack.c.b16 %v878, %v876
    %v909 = vpack.c.b16 %v879, %v877
    %v910 = vpack.c.b16 %v882, %v880
    %v911 = vpack.c.b16 %v883, %v881
    %v912 = vpack.c.b16 %v886, %v884
    %v913 = vpack.c.b16 %v887, %v885
    %v914 = vpack.c.b16 %v890, %v888
    %v915 = vpack.c.b16 %v891, %v889
    %v916 = vpack.c.b16 %v894, %v892
    %v917 = vpack.c.b16 %v895, %v893
    %v918 = vpack.c.b16 %v898, %v896
    %v919 = vpack.c.b16 %v899, %v897
    %v920 = vpack.c.b16 %v902, %v900
    %v921 = vpack.c.b16 %v903, %v901
    %v922 = vpack.c.b16 %v906, %v904
    %v923 = vpack.c.b16 %v907, %v905
    %940 = vmatpush.bf16.msra.mxu0 %v755
    %941 = vmatpush.bf16.msra.mxu0 %v754
    %942 = vmatpush.bf16.msra.mxu0 %v753
    %943 = vmatpush.bf16.msra.mxu0 %v752
    %944 = vmatpush.bf16.msra.mxu0 %v751
    %945 = vmatpush.bf16.msra.mxu0 %v750
    %946 = vmatpush.bf16.msra.mxu0 %v749
    %947 = vmatpush.bf16.msra.mxu0 %v748
    %948 = vmatmul.bf16.gmra.mxu0 %v908
    %v949 = vpop.f32.mrf.mxu0
    %v950 = vadd.f32 %v783, %v949
    %v951 = vpop.f32.mrf.mxu0
    %v952 = vadd.f32 %v788, %v951
    %953 = vmatmul.bf16.gmra.mxu0 %v910
    %v954 = vpop.f32.mrf.mxu0
    %v955 = vadd.f32 %v793, %v954
    %v956 = vpop.f32.mrf.mxu0
    %v957 = vadd.f32 %v798, %v956
    %958 = vmatmul.bf16.gmra.mxu0 %v912
    %v959 = vpop.f32.mrf.mxu0
    %v960 = vadd.f32 %v803, %v959
    %v961 = vpop.f32.mrf.mxu0
    %v962 = vadd.f32 %v808, %v961
    %963 = vmatmul.bf16.gmra.mxu0 %v914
    %v964 = vpop.f32.mrf.mxu0
    %v965 = vadd.f32 %v813, %v964
    %v966 = vpop.f32.mrf.mxu0
    %v967 = vadd.f32 %v818, %v966
    %968 = vmatmul.bf16.gmra.mxu0 %v916
    %v969 = vpop.f32.mrf.mxu0
    %v970 = vadd.f32 %v823, %v969
    %v971 = vpop.f32.mrf.mxu0
    %v972 = vadd.f32 %v828, %v971
    %973 = vmatmul.bf16.gmra.mxu0 %v918
    %v974 = vpop.f32.mrf.mxu0
    %v975 = vadd.f32 %v833, %v974
    %v976 = vpop.f32.mrf.mxu0
    %v977 = vadd.f32 %v838, %v976
    %978 = vmatmul.bf16.gmra.mxu0 %v920
    %v979 = vpop.f32.mrf.mxu0
    %v980 = vadd.f32 %v843, %v979
    %v981 = vpop.f32.mrf.mxu0
    %v982 = vadd.f32 %v848, %v981
    %983 = vmatmul.bf16.gmra.mxu0 %v922
    %v984 = vpop.f32.mrf.mxu0
    %v985 = vadd.f32 %v853, %v984
    %v986 = vpop.f32.mrf.mxu0
    %v987 = vadd.f32 %v858, %v986
    %988 = vdwg.mxu0
    %989 = vmatpush.bf16.msra.mxu0 %v763
    %990 = vmatpush.bf16.msra.mxu0 %v762
    %991 = vmatpush.bf16.msra.mxu0 %v761
    %992 = vmatpush.bf16.msra.mxu0 %v760
    %993 = vmatpush.bf16.msra.mxu0 %v759
    %994 = vmatpush.bf16.msra.mxu0 %v758
    %995 = vmatpush.bf16.msra.mxu0 %v757
    %996 = vmatpush.bf16.msra.mxu0 %v756
    %997 = vmatmul.bf16.gmra.mxu0 %v909
    %v998 = vpop.f32.mrf.mxu0
    %v999 = vadd.f32 %v950, %v998
    %v1000 = vpop.f32.mrf.mxu0
    %v1001 = vadd.f32 %v952, %v1000
    %1002 = vmatmul.bf16.gmra.mxu0 %v911
    %v1003 = vpop.f32.mrf.mxu0
    %v1004 = vadd.f32 %v955, %v1003
    %v1005 = vpop.f32.mrf.mxu0
    %v1006 = vadd.f32 %v957, %v1005
    %1007 = vmatmul.bf16.gmra.mxu0 %v913
    %v1008 = vpop.f32.mrf.mxu0
    %v1009 = vadd.f32 %v960, %v1008
    %v1010 = vpop.f32.mrf.mxu0
    %v1011 = vadd.f32 %v962, %v1010
    %1012 = vmatmul.bf16.gmra.mxu0 %v915
    %v1013 = vpop.f32.mrf.mxu0
    %v1014 = vadd.f32 %v965, %v1013
    %v1015 = vpop.f32.mrf.mxu0
    %v1016 = vadd.f32 %v967, %v1015
    %1017 = vmatmul.bf16.gmra.mxu0 %v917
    %v1018 = vpop.f32.mrf.mxu0
    %v1019 = vadd.f32 %v970, %v1018
    %v1020 = vpop.f32.mrf.mxu0
    %v1021 = vadd.f32 %v972, %v1020
    %1022 = vmatmul.bf16.gmra.mxu0 %v919
    %v1023 = vpop.f32.mrf.mxu0
    %v1024 = vadd.f32 %v975, %v1023
    %v1025 = vpop.f32.mrf.mxu0
    %v1026 = vadd.f32 %v977, %v1025
    %1027 = vmatmul.bf16.gmra.mxu0 %v921
    %v1028 = vpop.f32.mrf.mxu0
    %v1029 = vadd.f32 %v980, %v1028
    %v1030 = vpop.f32.mrf.mxu0
    %v1031 = vadd.f32 %v982, %v1030
    %1032 = vmatmul.bf16.gmra.mxu0 %v923
    %v1033 = vpop.f32.mrf.mxu0
    %v1034 = vadd.f32 %v985, %v1033
    %v1035 = vpop.f32.mrf.mxu0
    %v1036 = vadd.f32 %v987, %v1035
    %1037 = vdwg.mxu0
    %v1038 = vmax.f32 %v999, 0.0
    %v1039 = vmax.f32 %v1001, 0.0
    %v1040 = vmax.f32 %v1004, 0.0
    %v1041 = vmax.f32 %v1006, 0.0
    %v1042 = vmax.f32 %v1009, 0.0
    %v1043 = vmax.f32 %v1011, 0.0
    %v1044 = vmax.f32 %v1014, 0.0
    %v1045 = vmax.f32 %v1016, 0.0
    %v1046 = vmax.f32 %v1019, 0.0
    %v1047 = vmax.f32 %v1021, 0.0
    %v1048 = vmax.f32 %v1024, 0.0
    %v1049 = vmax.f32 %v1026, 0.0
    %v1050 = vmax.f32 %v1029, 0.0
    %v1051 = vmax.f32 %v1031, 0.0
    %v1052 = vmax.f32 %v1034, 0.0
    %v1053 = vmax.f32 %v1036, 0.0
    %v1054 = vld [vmem:[%s7] sm:$0xff]
    %v1055 = vld [vmem:[%s7 + $0x8] sm:$0xff]
    %v1056 = vld [vmem:[%s7 + $0x10] sm:$0xff]
    %v1057 = vld [vmem:[%s7 + $0x18] sm:$0xff]
    %v1058 = vld [vmem:[%s7 + $0x20] sm:$0xff]
    %v1059 = vld [vmem:[%s7 + $0x28] sm:$0xff]
    %v1060 = vld [vmem:[%s7 + $0x30] sm:$0xff]
    %v1061 = vld [vmem:[%s7 + $0x38] sm:$0xff]
    %v1062 = vld [vmem:[%s7 + $0x40] sm:$0xff]
    %v1063 = vld [vmem:[%s7 + $0x48] sm:$0xff]
    %v1064 = vld [vmem:[%s7 + $0x50] sm:$0xff]
    %v1065 = vld [vmem:[%s7 + $0x58] sm:$0xff]
    %v1066 = vld [vmem:[%s7 + $0x60] sm:$0xff]
    %v1067 = vld [vmem:[%s7 + $0x68] sm:$0xff]
    %v1068 = vld [vmem:[%s7 + $0x70] sm:$0xff]
    %v1069 = vld [vmem:[%s7 + $0x78] sm:$0xff]
    %1071 = vset.pattern.permute.xlu0 0
    %1072 = vperm.xlu0 %1071, %v1054
    %v1073 = vpop.permute.xlu0 %1072
    %1076 = vset.pattern.permute.xlu0 0
    %1077 = vperm.xlu0 %1076, %v1055
    %v1078 = vpop.permute.xlu0 %1077
    %1081 = vset.pattern.permute.xlu0 0
    %1082 = vperm.xlu0 %1081, %v1056
    %v1083 = vpop.permute.xlu0 %1082
    %1086 = vset.pattern.permute.xlu0 0
    %1087 = vperm.xlu0 %1086, %v1057
    %v1088 = vpop.permute.xlu0 %1087
    %1091 = vset.pattern.permute.xlu0 0
    %1092 = vperm.xlu0 %1091, %v1058
    %v1093 = vpop.permute.xlu0 %1092
    %1096 = vset.pattern.permute.xlu0 0
    %1097 = vperm.xlu0 %1096, %v1059
    %v1098 = vpop.permute.xlu0 %1097
    %1101 = vset.pattern.permute.xlu0 0
    %1102 = vperm.xlu0 %1101, %v1060
    %v1103 = vpop.permute.xlu0 %1102
    %1106 = vset.pattern.permute.xlu0 0
    %1107 = vperm.xlu0 %1106, %v1061
    %v1108 = vpop.permute.xlu0 %1107
    %1111 = vset.pattern.permute.xlu0 0
    %1112 = vperm.xlu0 %1111, %v1062
    %v1113 = vpop.permute.xlu0 %1112
    %1116 = vset.pattern.permute.xlu0 0
    %1117 = vperm.xlu0 %1116, %v1063
    %v1118 = vpop.permute.xlu0 %1117
    %1121 = vset.pattern.permute.xlu0 0
    %1122 = vperm.xlu0 %1121, %v1064
    %v1123 = vpop.permute.xlu0 %1122
    %1126 = vset.pattern.permute.xlu0 0
    %1127 = vperm.xlu0 %1126, %v1065
    %v1128 = vpop.permute.xlu0 %1127
    %1131 = vset.pattern.permute.xlu0 0
    %1132 = vperm.xlu0 %1131, %v1066
    %v1133 = vpop.permute.xlu0 %1132
    %1136 = vset.pattern.permute.xlu0 0
    %1137 = vperm.xlu0 %1136, %v1067
    %v1138 = vpop.permute.xlu0 %1137
    %1141 = vset.pattern.permute.xlu0 0
    %1142 = vperm.xlu0 %1141, %v1068
    %v1143 = vpop.permute.xlu0 %1142
    %1146 = vset.pattern.permute.xlu0 0
    %1147 = vperm.xlu0 %1146, %v1069
    %v1148 = vpop.permute.xlu0 %1147
    %v1150 = vmul.f32 %v1073, %v1038
    %v1151 = vmul.f32 %v1078, %v1039
    %v1152 = vmul.f32 %v1083, %v1040
    %v1153 = vmul.f32 %v1088, %v1041
    %v1154 = vmul.f32 %v1093, %v1042
    %v1155 = vmul.f32 %v1098, %v1043
    %v1156 = vmul.f32 %v1103, %v1044
    %v1157 = vmul.f32 %v1108, %v1045
    %v1158 = vmul.f32 %v1113, %v1046
    %v1159 = vmul.f32 %v1118, %v1047
    %v1160 = vmul.f32 %v1123, %v1048
    %v1161 = vmul.f32 %v1128, %v1049
    %v1162 = vmul.f32 %v1133, %v1050
    %v1163 = vmul.f32 %v1138, %v1051
    %v1164 = vmul.f32 %v1143, %v1052
    %v1165 = vmul.f32 %v1148, %v1053
    %vm1166 = vcmask 64512
    %v1167 = vsel %vm1166, %v1150, 0.0
    %v1168 = vsel %vm1166, %v1151, 0.0
    %v1169 = vadd.f32 %v1167, %v1168
    %v1170 = vsel %vm1166, %v1152, 0.0
    %v1171 = vadd.f32 %v1169, %v1170
    %v1172 = vsel %vm1166, %v1153, 0.0
    %v1173 = vadd.f32 %v1171, %v1172
    %v1174 = vsel %vm1166, %v1154, 0.0
    %v1175 = vadd.f32 %v1173, %v1174
    %v1176 = vsel %vm1166, %v1155, 0.0
    %v1177 = vadd.f32 %v1175, %v1176
    %v1178 = vsel %vm1166, %v1156, 0.0
    %v1179 = vadd.f32 %v1177, %v1178
    %v1180 = vsel %vm1166, %v1157, 0.0
    %v1181 = vadd.f32 %v1179, %v1180
    %v1182 = vsel %vm1166, %v1158, 0.0
    %v1183 = vadd.f32 %v1181, %v1182
    %v1184 = vsel %vm1166, %v1159, 0.0
    %v1185 = vadd.f32 %v1183, %v1184
    %v1186 = vsel %vm1166, %v1160, 0.0
    %v1187 = vadd.f32 %v1185, %v1186
    %v1188 = vsel %vm1166, %v1161, 0.0
    %v1189 = vadd.f32 %v1187, %v1188
    %v1190 = vsel %vm1166, %v1162, 0.0
    %v1191 = vadd.f32 %v1189, %v1190
    %v1192 = vsel %vm1166, %v1163, 0.0
    %v1193 = vadd.f32 %v1191, %v1192
    %v1194 = vsel %vm1166, %v1164, 0.0
    %v1195 = vadd.f32 %v1193, %v1194
    %v1196 = vsel %vm1166, %v1165, 0.0
    %v1197 = vadd.f32 %v1195, %v1196
    %v1198 = vrot.slane %v1197, 4
    %v1199 = vadd.f32 %v1197, %v1198
    %v1200 = vrot.slane %v1199, 2
    %v1201 = vadd.f32 %v1199, %v1200
    %v1202 = vrot.slane %v1201, 1
    %v1203 = vadd.f32 %v1201, %v1202
    %v1204 = vld [vmem:[#allocation2] sm:$0x1]
    %1206 = vset.pattern.permute.xlu0 0
    %1207 = vperm.xlu0 %1206, %v1204
    %v1208 = vpop.permute.xlu0 %1207
    %v1210 = vperm.slane %v1208, 0
    %v1211 = vadd.f32 %v1203, %v1210
    %v1212 = vxor.u32 %v1211, 2147483648
    %v1213 = vmul.f32 %v1212, 1.442695
    %v1214 = vpow.pop %v1213
    %v1215 = vadd.f32 %v1214, 1.0
    %v1216 = vrcp.pop %v1215
    %v1217 = vmul.f32 %v1215, %v1216
    %v1218 = vsub.f32 1.0, %v1217
    %v1219 = vmul.f32 %v1216, %v1218
    %v1220 = vadd.f32 %v1216, %v1219
    %vm1221 = vweird.f32 %v1215
    %vm1222 = vweird.f32 %v1216
    %vm1223 = vmor %vm1221, %vm1222
    %v1224 = vsel %vm1223, %v1216, %v1220
    %v1225 = vand.u32 2147483647, %v1215
    %vm1226 = vcmp.eq.f32.partialorder %v1225, 8.507059e+37
    %v1227 = vand.u32 %v1215, 2147483648
    %v1228 = vor.u32 1.1754944e-38, %v1227
    %v1229 = vsel %vm1226, %v1228, %v1224
    %v1230 = vmul.f32 1.0, %v1229
    %vm1231 = vcmask 57344
    %1232 = vst.msk [vmem:[#allocation3] sm:$0x1] %vm1231, %v1230
    // Predicated region
    $region38: #{tpu_custom_call.1} parent=1 // pred_check
      _
    $region39: #{tpu_custom_call.1} parent=1 // pred_check_branch
      %1234 = sbr.rel (0) target = $region41
    $region40: #{tpu_custom_call.1} parent=1 // pred_region
      %1236 = vsyncadd [#allocation4], 0
      %s1238 = sshll.u32 [#allocation3], 4
      %s1239 = int_to_ptr.vmem [resolvable:$true] %s1238
      %s1240 = sshll.u32 %s9, 4
      %s1241 = int_to_ptr.hbm [resolvable:$true] %s1240
      %1243 = dma.vmem_to_hbm [thread:$0]  %s1239, 16, %s1241, [#allocation4]
    $region41: #{tpu_custom_call.1} parent=1 // pred_fallthru
      _
    // Predicated region
    $region42: #{tpu_custom_call.1} parent=1 // pred_check
      _
    $region43: #{tpu_custom_call.1} parent=1 // pred_check_branch
      %1245 = sbr.rel (0) target = $region45
    $region44: #{tpu_custom_call.1} parent=1 // pred_region
      %1247 = dma.done [#allocation4], 16
    $region45: #{tpu_custom_call.1} parent=1 // pred_fallthru
      _
    %1248 = vsyncpa [#allocation4], 1

</llo_original>
